<compile_context>
chip_gen: v7x
topology: tpu7x:2x2x1
jax: 0.10.0
libtpu: 0.0.40
codegen_flags: <defaults>
</compile_context>

<pallas_src>
import jax
import jax.numpy as jnp
from jax.experimental import pallas as pl
from jax.experimental.pallas import tpu as pltpu

LRELU_SLOPE = 0.01                 # nn.LeakyReLU() default
BN_EPS = 1e-5                      # nn.BatchNorm2d default
_VMEM_LIMIT = 48 * 1024 * 1024     # scoped VMEM cap (<= v7x 64 MiB physical)
_TILE_BUDGET = 16 * 1024 * 1024    # per-call double-buffered block budget
_MAX_TILE_ROWS = 1024              # ~86% of HBM roofline for mem-bound row tiles
_MAX_W2_BYTES = 4 * 1024 * 1024    # cap on the packed block-diagonal RHS
_MAX_FUSED_WBLOCK = 2 * 1024 * 1024    # per-channel folded-weight block cap
_MAX_FUSED_WALL = 32 * 1024 * 1024     # total folded-weight cap (HBM resident)


# ----------------------------- small helpers -----------------------------

def _round_up(x, m):
    return ((x + m - 1) // m) * m


def _row_tile(rows, row_bytes, align=8, min_tiles=4):
    """Row tile: multiple of `align`, VMEM-budgeted, >= min_tiles tiles (megacore)."""
    cap = max(align, (_TILE_BUDGET // max(1, 2 * row_bytes)) // align * align)
    tr = max(align, min(_MAX_TILE_ROWS, cap))
    want = _round_up(max(1, -(-rows // min_tiles)), align)
    tr = min(tr, max(align, want))
    return tr, _round_up(rows, tr)


def _pick_pack(cin, kkc, max_r=32, itemsize=4):
    """Pack r pixels per matmul row; prefer r making BOTH r*cin and r*kkc 128-dense."""
    best, best_score = 1, -1
    for r in range(1, max_r + 1):
        if (r * cin) * (r * kkc) * itemsize > _MAX_W2_BYTES:
            break
        score = int((r * cin) % 128 == 0) + int((r * kkc) % 128 == 0)
        if score > best_score:
            best, best_score = r, score
        if score == 2:
            break
    return best


def _pick_th(hin, bytes_per_row, fixed_bytes):
    """Largest TH dividing hin with TH % 8 == 0 (or TH == hin) fitting the budget."""
    for th in range(hin, 0, -1):
        if hin % th:
            continue
        if th != hin and th % 8:
            continue
        if fixed_bytes + 2 * th * bytes_per_row <= _TILE_BUDGET:
            return th
    return None


def _mosaic_params(n_axes):
    return pltpu.CompilerParams(dimension_semantics=("parallel",) * n_axes,
                                vmem_limit_bytes=_VMEM_LIMIT)


# ----------------------------- Pallas kernels -----------------------------

def _matmul_stats_kernel(x_ref, w_ref, sum_ref, sq_ref):
    # MXU matmul (f32 accumulation); only per-sublane-partial column stats go to HBM.
    y = jnp.dot(x_ref[...], w_ref[...], preferred_element_type=jnp.float32)
    tm, c = y.shape
    yp = y.reshape(tm // 8, 8, c)
    sum_ref[...] = jnp.sum(yp, axis=0)
    sq_ref[...] = jnp.sum(yp * yp, axis=0)


def _fused_apply_kernel(x_ref, w_ref, o_ref):
    # Per-channel recompute matmul (BN scale folded into w, shift via ones column),
    # LeakyReLU, direct write into the NCHW-reshapable output block.
    z = jnp.dot(x_ref[0], w_ref[0], preferred_element_type=jnp.float32)
    z = jnp.where(z >= 0, z, LRELU_SLOPE * z)
    o_ref[...] = z.reshape(o_ref.shape).astype(o_ref.dtype)


def _matmul_bn_lrelu_kernel(x_ref, w_ref, scale_ref, shift_ref, o_ref):
    # Fallback apply: packed matmul recompute + BN scale/shift + LeakyReLU.
    y = jnp.dot(x_ref[...], w_ref[...], preferred_element_type=jnp.float32)
    z = y * scale_ref[...] + shift_ref[...]
    o_ref[...] = jnp.where(z >= 0, z, LRELU_SLOPE * z)


def _matmul_kernel(x_ref, w_ref, o_ref):
    o_ref[...] = jnp.dot(x_ref[...], w_ref[...], preferred_element_type=jnp.float32)


def _colstats_kernel(y_ref, sum_ref, sq_ref):
    y = y_ref[...]
    tm, c = y.shape
    yp = y.reshape(tm // 8, 8, c)
    sum_ref[...] = jnp.sum(yp, axis=0)
    sq_ref[...] = jnp.sum(yp * yp, axis=0)


def _bn_lrelu_kernel(y_ref, scale_ref, shift_ref, o_ref):
    z = y_ref[...] * scale_ref[...] + shift_ref[...]
    o_ref[...] = jnp.where(z >= 0, z, LRELU_SLOPE * z)


# ----------------------------- kernel wrappers -----------------------------

def matmul_colstats(x2, w2, tile_rows):
    m2, kc = x2.shape
    c = w2.shape[1]
    nt = m2 // tile_rows
    sums, sqs = pl.pallas_call(
        _matmul_stats_kernel,
        out_shape=(jax.ShapeDtypeStruct((nt * 8, c), jnp.float32),
                   jax.ShapeDtypeStruct((nt * 8, c), jnp.float32)),
        grid_spec=pltpu.PrefetchScalarGridSpec(
            num_scalar_prefetch=0, grid=(nt,),
            in_specs=[pl.BlockSpec((tile_rows, kc), lambda i: (i, 0)),
                      pl.BlockSpec((kc, c), lambda i: (0, 0))],
            out_specs=(pl.BlockSpec((8, c), lambda i: (i, 0)),
                       pl.BlockSpec((8, c), lambda i: (i, 0)))),
        compiler_params=_mosaic_params(1),
    )(x2, w2)
    return sums.sum(axis=0), sqs.sum(axis=0)


def fused_transconv_apply(x3_aug, w_aug, th):
    n, hin, wcols = x3_aug.shape
    cout, _, kwout = w_aug.shape
    return pl.pallas_call(
        _fused_apply_kernel,
        out_shape=jax.ShapeDtypeStruct((n, cout, hin, kwout), jnp.float32),
        grid_spec=pltpu.PrefetchScalarGridSpec(
            num_scalar_prefetch=0, grid=(n, hin // th, cout),
            in_specs=[pl.BlockSpec((1, th, wcols), lambda b, i, c: (b, i, 0)),
                      pl.BlockSpec((1, wcols, kwout), lambda b, i, c: (c, 0, 0))],
            out_specs=pl.BlockSpec((1, 1, th, kwout), lambda b, i, c: (b, c, i, 0))),
        compiler_params=_mosaic_params(3),
    )(x3_aug, w_aug)


def matmul_bn_lrelu(x2, w2, scale_row, shift_row, tile_rows):
    m2, kc = x2.shape
    c = w2.shape[1]
    nt = m2 // tile_rows
    return pl.pallas_call(
        _matmul_bn_lrelu_kernel,
        out_shape=jax.ShapeDtypeStruct((m2, c), jnp.float32),
        grid_spec=pltpu.PrefetchScalarGridSpec(
            num_scalar_prefetch=0, grid=(nt,),
            in_specs=[pl.BlockSpec((tile_rows, kc), lambda i: (i, 0)),
                      pl.BlockSpec((kc, c), lambda i: (0, 0)),
                      pl.BlockSpec((1, c), lambda i: (0, 0)),
                      pl.BlockSpec((1, c), lambda i: (0, 0))],
            out_specs=pl.BlockSpec((tile_rows, c), lambda i: (i, 0))),
        compiler_params=_mosaic_params(1),
    )(x2, w2, scale_row.reshape(1, c), shift_row.reshape(1, c))


def matmul_plain(x2, w2, tile_rows):
    m2, kc = x2.shape
    c = w2.shape[1]
    nt = m2 // tile_rows
    return pl.pallas_call(
        _matmul_kernel,
        out_shape=jax.ShapeDtypeStruct((m2, c), jnp.float32),
        grid_spec=pltpu.PrefetchScalarGridSpec(
            num_scalar_prefetch=0, grid=(nt,),
            in_specs=[pl.BlockSpec((tile_rows, kc), lambda i: (i, 0)),
                      pl.BlockSpec((kc, c), lambda i: (0, 0))],
            out_specs=pl.BlockSpec((tile_rows, c), lambda i: (i, 0))),
        compiler_params=_mosaic_params(1),
    )(x2, w2)


def colstats(y2d, tile_rows):
    rows, c = y2d.shape
    nt = rows // tile_rows
    sums, sqs = pl.pallas_call(
        _colstats_kernel,
        out_shape=(jax.ShapeDtypeStruct((nt * 8, c), jnp.float32),
                   jax.ShapeDtypeStruct((nt * 8, c), jnp.float32)),
        grid_spec=pltpu.PrefetchScalarGridSpec(
            num_scalar_prefetch=0, grid=(nt,),
            in_specs=[pl.BlockSpec((tile_rows, c), lambda i: (i, 0))],
            out_specs=(pl.BlockSpec((8, c), lambda i: (i, 0)),
                       pl.BlockSpec((8, c), lambda i: (i, 0)))),
        compiler_params=_mosaic_params(1),
    )(y2d)
    return sums.sum(axis=0), sqs.sum(axis=0)


def bn_lrelu_apply(y2d, scale_row, shift_row, tile_rows):
    rows, c = y2d.shape
    nt = rows // tile_rows
    return pl.pallas_call(
        _bn_lrelu_kernel,
        out_shape=jax.ShapeDtypeStruct((rows, c), jnp.float32),
        grid_spec=pltpu.PrefetchScalarGridSpec(
            num_scalar_prefetch=0, grid=(nt,),
            in_specs=[pl.BlockSpec((tile_rows, c), lambda i: (i, 0)),
                      pl.BlockSpec((1, c), lambda i: (0, 0)),
                      pl.BlockSpec((1, c), lambda i: (0, 0))],
            out_specs=pl.BlockSpec((tile_rows, c), lambda i: (i, 0))),
        input_output_aliases={0: 0},   # write z in place over the slab
        compiler_params=_mosaic_params(1),
    )(y2d, scale_row.reshape(1, c), shift_row.reshape(1, c))


def _bn_scale_shift(col_sum, col_sq, count, cout, gamma, beta):
    """Fold per-column sums (channel fastest) into per-channel BN scale/shift."""
    ch_sum = col_sum.reshape(-1, cout).sum(axis=0)
    ch_sq = col_sq.reshape(-1, cout).sum(axis=0)
    mean = ch_sum / count
    var = jnp.maximum(ch_sq / count - mean * mean, 0.0)   # clamp: one-pass variance
    scale_c = gamma * jax.lax.rsqrt(var + BN_EPS)
    shift_c = beta - mean * scale_c
    return scale_c, shift_c


# ------------------------------ forward ------------------------------

def mytransconv_forward(x_nchw, weight, bias, gamma, beta, stride,
                        operand_dtype=jnp.float32):
    """ConvTranspose2d(K, stride, pad=0) -> BatchNorm2d (batch stats) -> LeakyReLU.

    `operand_dtype=jnp.bfloat16` halves activation/weight DMA bytes on v6e/v7x
    (f32 accumulation and f32 statistics are kept); the demo uses f32 to match the
    tight reference tolerance.
    """
    n, cin, hin, win = x_nchw.shape
    cin_w, cout, k, k2 = weight.shape
    assert cin == cin_w and k == k2
    hout = (hin - 1) * stride + k
    wout = (win - 1) * stride + k
    kkc = k * k * cout
    del bias  # conv bias cancels exactly under training-mode BatchNorm

    itemsize = jnp.dtype(operand_dtype).itemsize
    align = 8 if itemsize >= 4 else 16

    m = n * hin * win
    x_nhwc = jnp.transpose(x_nchw, (0, 2, 3, 1))
    x_flat = x_nhwc.reshape(m, cin)
    w_flat = jnp.transpose(weight, (0, 2, 3, 1)).reshape(cin, kkc)   # cols: (kh, kw, co)

    # packed operands shared by the stats pass and the fallback/general matmul
    r = _pick_pack(cin, kkc, itemsize=itemsize)
    m2_raw = -(-m // r)
    tile_rows, m2 = _row_tile(m2_raw, 4 * (r * cin + 2 * r * kkc), align=align)
    mp = m2 * r
    x2 = jnp.pad(x_flat, ((0, mp - m), (0, 0))).reshape(m2, r * cin).astype(operand_dtype)
    w2 = jnp.kron(jnp.eye(r, dtype=w_flat.dtype), w_flat).astype(operand_dtype)

    count = jnp.float32(n * hout * wout)

    if stride == k:
        # ---- pass 1: stats only (conv output == matmul output when stride == K) ----
        col_sum, col_sq = matmul_colstats(x2, w2, tile_rows)
        scale_c, shift_c = _bn_scale_shift(col_sum, col_sq, count, cout, gamma, beta)

        # ---- pass 2 (preferred): recompute matmul per channel, write NCHW directly ----
        kwout = k * wout
        wcols = win * cin + 1
        wblock_bytes = 4 * wcols * kwout
        if wblock_bytes <= _MAX_FUSED_WBLOCK and cout * wblock_bytes <= _MAX_FUSED_WALL:
            th = _pick_th(hin, 4 * (wcols + 2 * kwout), 2 * wblock_bytes)
            if th is not None:
                # folded weight: w_all[co, (wi,ci), (kh, wi', kw)] = W[ci,co,kh,kw]*(wi==wi')
                eye_p = jnp.eye(win, dtype=jnp.float32)
                w_all = jnp.einsum('pq,iokl->opikql', eye_p, weight.astype(jnp.float32))
                w_all = w_all.reshape(cout, win * cin, kwout)
                w_aug = jnp.concatenate(
                    [w_all * scale_c[:, None, None],
                     jnp.broadcast_to(shift_c[:, None, None], (cout, 1, kwout))],
                    axis=1).astype(operand_dtype)                       # (cout, wcols, kwout)
                x3_aug = jnp.concatenate(
                    [x_nhwc.reshape(n, hin, win * cin),
                     jnp.ones((n, hin, 1), x_nhwc.dtype)],
                    axis=-1).astype(operand_dtype)                      # (n, hin, wcols)
                o4 = fused_transconv_apply(x3_aug, w_aug, th)           # (n,cout,hin,K*wout)
                return o4.reshape(n, cout, hout, wout)                  # free reshape

        # ---- pass 2 (fallback for very large folded weights): packed recompute ----
        reps = (r * kkc) // cout
        scale_row = jnp.tile(scale_c, reps)
        shift_row = jnp.tile(shift_c, reps)
        z2 = matmul_bn_lrelu(x2, w2, scale_row, shift_row, tile_rows)
        z6 = z2.reshape(mp, kkc)[:m].reshape(n, hin, win, k, k, cout)
        return z6.transpose(0, 5, 1, 3, 2, 4).reshape(n, cout, hout, wout)

    # ---- general path (stride < K overlap or stride > K gaps) ----
    # TODO(synk): the overlapping scatter-add stays in XLA glue (data-dependent
    # accumulation has no rectangular BlockSpec expression); move to an
    # output-stationary Pallas kernel later.
    y2 = matmul_plain(x2, w2, tile_rows)
    y6 = y2.reshape(mp, kkc)[:m].reshape(n, hin, win, k, k, cout)
    slab = jnp.zeros((n, hout, wout, cout), jnp.float32)
    for kh in range(k):
        for kw in range(k):
            slab = slab.at[:, kh:kh + (hin - 1) * stride + 1:stride,
                           kw:kw + (win - 1) * stride + 1:stride, :].add(
                               y6[:, :, :, kh, kw, :])
    rows, c2 = n * hout, wout * cout
    tr2, rp = _row_tile(rows, 4 * 2 * c2)
    slab2 = jnp.pad(slab.reshape(rows, c2), ((0, rp - rows), (0, 0)))
    cs, cq = colstats(slab2, tr2)
    scale_c, shift_c = _bn_scale_shift(cs, cq, count, cout, gamma, beta)
    z2 = bn_lrelu_apply(slab2, jnp.tile(scale_c, wout), jnp.tile(shift_c, wout), tr2)
    return z2[:rows].reshape(n, hout, wout, cout).transpose(0, 3, 1, 2)


# ------------------------------ demo ------------------------------

if __name__ == "__main__":
    key = jax.random.PRNGKey(0)
    N, in_ch, out_ch = 2, 4, 8
    in_dim, out_dim, stride = 16, 32, 2
    K = int(out_dim - (in_dim - 1) * stride)   # same formula as the module (= 2)

    kx, kw, kb = jax.random.split(key, 3)
    x = jax.random.normal(kx, (N, in_ch, in_dim, in_dim), jnp.float32)
    bound = 1.0 / (in_ch * K * K) ** 0.5
    weight = jax.random.uniform(kw, (in_ch, out_ch, K, K), jnp.float32, -bound, bound)
    bias = jax.random.uniform(kb, (out_ch,), jnp.float32, -bound, bound)
    gamma = jnp.ones((out_ch,), jnp.float32)   # BatchNorm2d default affine init
    beta = jnp.zeros((out_ch,), jnp.float32)
    # TODO(synk): BatchNorm running-stat buffer updates (training side effect) are not
    # modeled; they do not affect the training-mode forward output.

    fwd = jax.jit(lambda xx, ww, bb, gg, bt: mytransconv_forward(xx, ww, bb, gg, bt, stride))
    out = jax.block_until_ready(fwd(x, weight, bias, gamma, beta))
    assert out.shape == (N, out_ch, out_dim, out_dim), out.shape

    # plain-JAX reference (ConvTranspose2d definition + train-mode BN + LeakyReLU)
    def ref_forward(x, weight, bias, gamma, beta, stride):
        Nn, Ci, Hi, Wi = x.shape
        _, Co, Kk, _ = weight.shape
        Ho, Wo = (Hi - 1) * stride + Kk, (Wi - 1) * stride + Kk
        y = jnp.einsum('nihw,iokl->nohwkl', x, weight)
        o = jnp.zeros((Nn, Co, Ho, Wo), jnp.float32)
        for kh in range(Kk):
            for kw2 in range(Kk):
                o = o.at[:, :, kh:kh + (Hi - 1) * stride + 1:stride,
                               kw2:kw2 + (Wi - 1) * stride + 1:stride].add(y[..., kh, kw2])
        o = o + bias[None, :, None, None]
        m = o.mean(axis=(0, 2, 3), keepdims=True)
        v = ((o - m) ** 2).mean(axis=(0, 2, 3), keepdims=True)
        z = (o - m) / jnp.sqrt(v + BN_EPS) * gamma[None, :, None, None] \
            + beta[None, :, None, None]
        return jnp.where(z >= 0, z, LRELU_SLOPE * z)

    ref = ref_forward(x, weight, bias, gamma, beta, stride)
    err = float(jnp.max(jnp.abs(out - ref)))
    assert jnp.allclose(out, ref, atol=1e-4, rtol=1e-4), err

    print("KERNEL_OK")
</pallas_src>

<mosaic_0001>
module attributes {stable_mosaic.version = 11 : i64} {
  func.func @_matmul_stats_kernel(%arg0: i32, %arg1: memref<8x128xf32, #tpu.memory_space<vmem>>, %arg2: memref<128x1024xf32, #tpu.memory_space<vmem>>, %arg3: memref<8x1024xf32, #tpu.memory_space<vmem>>, %arg4: memref<8x1024xf32, #tpu.memory_space<vmem>>) attributes {dimension_semantics = [#tpu.dimension_semantics<parallel>], iteration_bounds = array<i64: 2>, scalar_prefetch = 0 : i64, scratch_operands = 0 : i64, tpu.core_type = #tpu.core_type<tc>, window_params = [{transform_indices = @transform_0, window_bounds = array<i64: 8, 128>}, {pipeline_mode = #tpu.pipeline_mode<synchronous>, transform_indices = @transform_1, window_bounds = array<i64: 128, 1024>}, {transform_indices = @transform_2, window_bounds = array<i64: 8, 1024>}, {transform_indices = @transform_3, window_bounds = array<i64: 8, 1024>}]} {
    %c0 = arith.constant 0 : index
    %c0_0 = arith.constant 0 : index
    %0 = vector.load %arg1[%c0, %c0_0] : memref<8x128xf32, #tpu.memory_space<vmem>>, vector<8x128xf32>
    %c0_1 = arith.constant 0 : index
    %c0_2 = arith.constant 0 : index
    %1 = vector.load %arg2[%c0_1, %c0_2] : memref<128x1024xf32, #tpu.memory_space<vmem>>, vector<128x1024xf32>
    %cst = arith.constant dense<0.000000e+00> : vector<8x1024xf32>
    %2 = tpu.matmul %0, %1, %cst {dimension_numbers = #tpu.dot_dimension_numbers<[1], [0], [0], [1], [0, 0, 1, 1], [], []>} : vector<8x128xf32>, vector<128x1024xf32>, vector<8x1024xf32> -> vector<8x1024xf32>
    %3 = vector.shape_cast %2 : vector<8x1024xf32> to vector<1x8x1024xf32>
    %cst_3 = arith.constant dense<0.000000e+00> : vector<8x1024xf32>
    %4 = vector.multi_reduction <add>, %3, %cst_3 [0] : vector<1x8x1024xf32> to vector<8x1024xf32>
    %c0_4 = arith.constant 0 : index
    %c0_5 = arith.constant 0 : index
    %5 = vector.load %arg3[%c0_4, %c0_5] : memref<8x1024xf32, #tpu.memory_space<vmem>>, vector<8x1024xf32>
    tpu.vector_store %arg3[%c0_4, %c0_5], %4 {strides = array<i32>} : memref<8x1024xf32, #tpu.memory_space<vmem>>, vector<8x1024xf32>,
    %6 = arith.mulf %3, %3 : vector<1x8x1024xf32>
    %cst_6 = arith.constant dense<0.000000e+00> : vector<8x1024xf32>
    %7 = vector.multi_reduction <add>, %6, %cst_6 [0] : vector<1x8x1024xf32> to vector<8x1024xf32>
    %c0_7 = arith.constant 0 : index
    %c0_8 = arith.constant 0 : index
    %8 = vector.load %arg4[%c0_7, %c0_8] : memref<8x1024xf32, #tpu.memory_space<vmem>>, vector<8x1024xf32>
    tpu.vector_store %arg4[%c0_7, %c0_8], %7 {strides = array<i32>} : memref<8x1024xf32, #tpu.memory_space<vmem>>, vector<8x1024xf32>,
    return
  }
  func.func @transform_0(%arg0: i32) -> (i32, i32) {
    %c0_i32 = arith.constant 0 : i32
    %c0_i32_0 = arith.constant 0 : i32
    return %arg0, %c0_i32 : i32, i32
  }
  func.func @transform_1(%arg0: i32) -> (i32, i32) {
    %c0_i32 = arith.constant 0 : i32
    %c0_i32_0 = arith.constant 0 : i32
    %c0_i32_1 = arith.constant 0 : i32
    return %c0_i32, %c0_i32_0 : i32, i32
  }
  func.func @transform_2(%arg0: i32) -> (i32, i32) {
    %c0_i32 = arith.constant 0 : i32
    %c0_i32_0 = arith.constant 0 : i32
    return %arg0, %c0_i32 : i32, i32
  }
  func.func @transform_3(%arg0: i32) -> (i32, i32) {
    %c0_i32 = arith.constant 0 : i32
    %c0_i32_0 = arith.constant 0 : i32
    return %arg0, %c0_i32 : i32, i32
  }
}

module attributes {stable_mosaic.version = 11 : i64} {
  func.func @_fused_apply_kernel(%arg0: i32, %arg1: i32, %arg2: i32, %arg3: memref<1x16x65xf32, #tpu.memory_space<vmem>>, %arg4: memref<1x65x64xf32, #tpu.memory_space<vmem>>, %arg5: memref<1x1x16x64xf32, #tpu.memory_space<vmem>>) attributes {dimension_semantics = [#tpu.dimension_semantics<parallel>, #tpu.dimension_semantics<parallel>, #tpu.dimension_semantics<parallel>], iteration_bounds = array<i64: 2, 1, 8>, scalar_prefetch = 0 : i64, scratch_operands = 0 : i64, tpu.core_type = #tpu.core_type<tc>, window_params = [{transform_indices = @transform_0, window_bounds = array<i64: 1, 16, 65>}, {transform_indices = @transform_1, window_bounds = array<i64: 1, 65, 64>}, {transform_indices = @transform_2, window_bounds = array<i64: 1, 1, 16, 64>}]} {
    %c0 = arith.constant 0 : index
    %c0_0 = arith.constant 0 : index
    %c0_1 = arith.constant 0 : index
    %0 = vector.load %arg3[%c0, %c0_0, %c0_1] : memref<1x16x65xf32, #tpu.memory_space<vmem>>, vector<1x16x65xf32>
    %1 = vector.shape_cast %0 : vector<1x16x65xf32> to vector<16x65xf32>
    %c0_2 = arith.constant 0 : index
    %c0_3 = arith.constant 0 : index
    %c0_4 = arith.constant 0 : index
    %2 = vector.load %arg4[%c0_2, %c0_3, %c0_4] : memref<1x65x64xf32, #tpu.memory_space<vmem>>, vector<1x65x64xf32>
    %3 = vector.shape_cast %2 : vector<1x65x64xf32> to vector<65x64xf32>
    %cst = arith.constant dense<0.000000e+00> : vector<16x64xf32>
    %4 = tpu.matmul %1, %3, %cst {dimension_numbers = #tpu.dot_dimension_numbers<[1], [0], [0], [1], [0, 0, 1, 1], [], []>} : vector<16x65xf32>, vector<65x64xf32>, vector<16x64xf32> -> vector<16x64xf32>
    %cst_5 = arith.constant 0.000000e+00 : f32
    %5 = vector.broadcast %cst_5 : f32 to vector<16x64xf32>
    %6 = arith.cmpf oge, %4, %5 : vector<16x64xf32>
    %cst_6 = arith.constant 0.00999999977 : f32
    %7 = vector.broadcast %cst_6 : f32 to vector<16x64xf32>
    %8 = arith.mulf %7, %4 : vector<16x64xf32>
    %9 = arith.select %6, %4, %8 : vector<16x64xi1>, vector<16x64xf32>
    %10 = vector.shape_cast %9 : vector<16x64xf32> to vector<1x1x16x64xf32>
    %c0_7 = arith.constant 0 : index
    %c0_8 = arith.constant 0 : index
    %c0_9 = arith.constant 0 : index
    %c0_10 = arith.constant 0 : index
    %11 = vector.load %arg5[%c0_7, %c0_8, %c0_9, %c0_10] : memref<1x1x16x64xf32, #tpu.memory_space<vmem>>, vector<1x1x16x64xf32>
    tpu.vector_store %arg5[%c0_7, %c0_8, %c0_9, %c0_10], %10 {strides = array<i32>} : memref<1x1x16x64xf32, #tpu.memory_space<vmem>>, vector<1x1x16x64xf32>,
    return
  }
  func.func @transform_0(%arg0: i32, %arg1: i32, %arg2: i32) -> (i32, i32, i32) {
    %c0_i32 = arith.constant 0 : i32
    %c0_i32_0 = arith.constant 0 : i32
    return %arg0, %arg1, %c0_i32 : i32, i32, i32
  }
  func.func @transform_1(%arg0: i32, %arg1: i32, %arg2: i32) -> (i32, i32, i32) {
    %c0_i32 = arith.constant 0 : i32
    %c0_i32_0 = arith.constant 0 : i32
    %c0_i32_1 = arith.constant 0 : i32
    return %arg2, %c0_i32, %c0_i32_0 : i32, i32, i32
  }
  func.func @transform_2(%arg0: i32, %arg1: i32, %arg2: i32) -> (i32, i32, i32, i32) {
    %c0_i32 = arith.constant 0 : i32
    %c0_i32_0 = arith.constant 0 : i32
    return %arg0, %arg2, %arg1, %c0_i32 : i32, i32, i32, i32
  }
}

</mosaic_0001>

<llo_original>
// kernel: mul.4
$region0: #{mul.4}
  %s0 = inlined_call_operand.hbm [shape: f32[4,2,2,8], index: 0, kind: input, shape index: {}]
  %s1 = inlined_call_operand.vmem [shape: f32[4,32], index: 1, kind: output, shape index: {}]
  $region1: #{mul.4} parent=0
    #allocation0 [shape = 'u8[8192]{0}', space=vmem, size = 0x2000, scoped, tag = 'operand span for operand 0']
    #allocation1 [shape = 's32[1]{0}', space=sflag, size = 0x4, scoped, tag = 'scoped memory for mul.4']
    #allocation2 [shape = 'u8[4096]{0}', space=vmem, size = 0x1000, scoped, tag = 'scoped mem for output reshape']
    #allocation3 [shape = 'u8[32768]{0}', space=vmem, size = 0x8000, scoped, tag = 'scoped mem for input reshape']
    %2 = vsyncpa [#allocation1], 0
    %s4 = ssub.s32 256, 256
    %5 = vsyncadd [#allocation1], %s4
    %s7 = sshll.u32 [#allocation0], 4
    %s8 = int_to_ptr.vmem [resolvable:$true] %s7
    %10 = dma.hbm_to_vmem [thread:$0]  %s0, 256, %s8, [#allocation1]
    %11 = dma.done [#allocation1], 256
    %s13 = sshllo.u32 0, 2
    %s14 = smul.addr 2, 7
    %s15 = scalar_lea.vmem [#allocation0], %s14
    %v16 = vld [vmem:[%s15] sm:%s13]
    %s17 = scalar_lea.vmem [#allocation3], 56
    %18 = vst [vmem:[%s17] sm:%s13] %v16
    %s19 = smul.addr 2, 6
    %s20 = scalar_lea.vmem [#allocation0], %s19
    %v21 = vld [vmem:[%s20] sm:%s13]
    %s22 = scalar_lea.vmem [#allocation3], 48
    %23 = vst [vmem:[%s22] sm:%s13] %v21
    %s24 = smul.addr 2, 5
    %s25 = scalar_lea.vmem [#allocation0], %s24
    %v26 = vld [vmem:[%s25] sm:%s13]
    %s27 = scalar_lea.vmem [#allocation3], 40
    %28 = vst [vmem:[%s27] sm:%s13] %v26
    %s29 = smul.addr 2, 4
    %s30 = scalar_lea.vmem [#allocation0], %s29
    %v31 = vld [vmem:[%s30] sm:%s13]
    %s32 = scalar_lea.vmem [#allocation3], 32
    %33 = vst [vmem:[%s32] sm:%s13] %v31
    %s34 = smul.addr 2, 3
    %s35 = scalar_lea.vmem [#allocation0], %s34
    %v36 = vld [vmem:[%s35] sm:%s13]
    %s37 = scalar_lea.vmem [#allocation3], 24
    %38 = vst [vmem:[%s37] sm:%s13] %v36
    %s39 = smul.addr 2, 2
    %s40 = scalar_lea.vmem [#allocation0], %s39
    %v41 = vld [vmem:[%s40] sm:%s13]
    %s42 = scalar_lea.vmem [#allocation3], 16
    %43 = vst [vmem:[%s42] sm:%s13] %v41
    %s44 = scalar_lea.vmem [#allocation0], 2
    %v45 = vld [vmem:[%s44] sm:%s13]
    %s46 = scalar_lea.vmem [#allocation3], 8
    %47 = vst [vmem:[%s46] sm:%s13] %v45
    %v48 = vld [vmem:[#allocation0] sm:%s13]
    %49 = vst [vmem:[#allocation3] sm:%s13] %v48
    %s50 = smov 3
    %v51 = vld [vmem:[#allocation3] ss:$16 sm:%s50]
    %s52 = smov 12
    %v53 = vld [vmem:[#allocation3] ss:$16 sm:%s52]
    %vm54 = vcmask 1043458
    %v55 = vsel %vm54, %v53, %v51
    %vm56 = vcmask 64512
    %57 = vst.msk [vmem:[#allocation2] sm:$0xf] %vm56, %v55
    %s58 = scalar_lea.vmem [#allocation3], 9
    %s59 = smov 3
    %v60 = vld [vmem:[%s58] ss:$16 sm:%s59]
    %s61 = scalar_lea.vmem [#allocation3], 9
    %s62 = smov 12
    %v63 = vld [vmem:[%s61] ss:$16 sm:%s62]
    %vm64 = vcmask 1043458
    %v65 = vsel %vm64, %v63, %v60
    %66 = vrot.lane.b32.xlu0 %v65, 24
    %v67 = vpop.permute.xlu0 %66
    %vm68 = vcmask 261312
    %69 = vst.msk [vmem:[#allocation2] sm:$0xf] %vm68, %v67
    %s70 = scalar_lea.vmem [#allocation3], 8
    %s71 = smov 3
    %v72 = vld [vmem:[%s70] ss:$16 sm:%s71]
    %s73 = scalar_lea.vmem [#allocation3], 8
    %s74 = smov 12
    %v75 = vld [vmem:[%s73] ss:$16 sm:%s74]
    %vm76 = vcmask 1043458
    %v77 = vsel %vm76, %v75, %v72
    %78 = vrot.lane.b32.xlu0 %v77, 16
    %v79 = vpop.permute.xlu0 %78
    %vm80 = vcmask 195712
    %81 = vst.msk [vmem:[#allocation2] sm:$0xf] %vm80, %v79
    %s82 = scalar_lea.vmem [#allocation3], 1
    %s83 = smov 3
    %v84 = vld [vmem:[%s82] ss:$16 sm:%s83]
    %s85 = scalar_lea.vmem [#allocation3], 1
    %s86 = smov 12
    %v87 = vld [vmem:[%s85] ss:$16 sm:%s86]
    %vm88 = vcmask 1043458
    %v89 = vsel %vm88, %v87, %v84
    %90 = vrot.lane.b32.xlu0 %v89, 8
    %v91 = vpop.permute.xlu0 %90
    %vm92 = vcmask 130112
    %93 = vst.msk [vmem:[#allocation2] sm:$0xf] %vm92, %v91
    %s95 = sshllo.u32 0, 4
    %v97 = vld [vmem:[#allocation2] sm:%s95]
    %s98 = sshllo.u32 0, 4
    %99 = vst [vmem:[%s1] sm:%s98] %v97
    %100 = vsyncpa [#allocation1], 1

// kernel: _lambda_.2
$region0: #{_lambda_.2}
  #allocation0 [shape = 'u32[]', space=smem, size = 0x4, offset = 0x4, fixed_abs, tag = 'smem constant byte address 0x4 - core index']
  #allocation1 [shape = 'u32[144,128]{1,0:T(1,128)}', space=vmem, size = 0x12000, scoped, tag = 'internal scratch']
  %s0 = inlined_call_operand.vmem [shape: f32[16,128], index: 0, kind: input, shape index: {}]
  %s1 = inlined_call_operand.vmem [shape: f32[128,1024], index: 1, kind: input, shape index: {}]
  %s2 = inlined_call_operand.vmem [shape: f32[16,1024], index: 2, kind: output, shape index: {0}]
  %s3 = inlined_call_operand.vmem [shape: f32[16,1024], index: 3, kind: output, shape index: {1}]
  %4 = xla_tuple %s2, %s3
  %s5 = sld [smem:[#allocation0]]
  $region49: #{_lambda_.2} parent=0
    _
  %s7 = ssub.s32 1, %s5
  %s8 = scalar_select 0, %s7, %s5
  loop: start=0, step=1, limit=4
  $region2: #{_lambda_.2} parent=0 // loop_pre_header
    _
  $region3: #{_lambda_.2} parent=0 // loop_header
    %s10 = sphi 0, %s14
    %p11 = scmp.ge.s32.totalorder %s10, 4
    %s20 = sphi 0, %s22
    %s23 = sphi 0, %s20
    %s24 = sphi 0, %s23
    %s40 = sphi 0, %s24
    %s44 = sphi 0, %s44
    %s46 = sphi 0, %s44
    %s47 = sphi 0, %s46
    %s61 = sphi 0, %s47
    %s67 = sphi 0, %s69
    %s70 = sphi 0, %s67
    %s71 = sphi 0, %s70
    %s87 = sphi 0, %s71
    %s93 = sphi 0, %s95
    %s96 = sphi 0, %s93
    %s97 = sphi 0, %s96
    %s113 = sphi 0, %s97
  $region4: #{_lambda_.2} parent=0 // loop_header_branch
    %13 = sbr.rel (%p11) target = $region8
  $region5: #{_lambda_.2} parent=0 // loop_body
    %s15 = ssub.s32 %s10, 1
    %s16 = ssub.s32 %s10, 2
    %s17 = sadd.s32 %s10, 1
    %s18 = ssub.s32 %s10, %s17
    %p19 = scmp.eq.s32.totalorder %s18, 0
    %s21 = sadd.s32 %s20, 1
    %s22 = scalar_select %p19, %s20, %s21
    %p25 = pneg %p19
    %p26 = scmp.eq.s32.totalorder %s10, 1
    %p27 = por %p25, %p26
    %p28 = scmp.ne.s32.totalorder %s20, %s23
    %p29 = scmp.eq.s32.totalorder %s10, 0
    %p30 = por %p28, %p29
    %p31 = scmp.ne.s32.totalorder %s20, %s23
    %p32 = scmp.eq.s32.totalorder %s15, 1
    %p33 = por %p31, %p32
    %p34 = scmp.ne.s32.totalorder %s23, %s24
    %p35 = scmp.eq.s32.totalorder %s15, 0
    %p36 = por %p34, %p35
    %p37 = scmp.ne.s32.totalorder %s23, %s24
    %p38 = scmp.eq.s32.totalorder %s16, 1
    %p39 = por %p37, %p38
    %p41 = scmp.ne.s32.totalorder %s24, %s40
    %p42 = scmp.eq.s32.totalorder %s16, 0
    %p43 = por %p41, %p42
    %s45 = sadd.s32 %s44, 1
    %p48 = scmp.eq.s32.totalorder %s10, 1
    %p49 = scmp.ne.s32.totalorder %s44, %s46
    %p50 = scmp.eq.s32.totalorder %s10, 0
    %p51 = por %p49, %p50
    %p52 = scmp.ne.s32.totalorder %s44, %s46
    %p53 = scmp.eq.s32.totalorder %s15, 1
    %p54 = por %p52, %p53
    %p55 = scmp.ne.s32.totalorder %s46, %s47
    %p56 = scmp.eq.s32.totalorder %s15, 0
    %p57 = por %p55, %p56
    %p58 = scmp.ne.s32.totalorder %s46, %s47
    %p59 = scmp.eq.s32.totalorder %s16, 1
    %p60 = por %p58, %p59
    %p62 = scmp.ne.s32.totalorder %s47, %s61
    %p63 = scmp.eq.s32.totalorder %s16, 0
    %p64 = por %p62, %p63
    %s65 = ssub.s32 %s10, %s17
    %p66 = scmp.eq.s32.totalorder %s65, 0
    %s68 = sadd.s32 %s67, 1
    %s69 = scalar_select %p66, %s67, %s68
    %p72 = pneg %p66
    %p73 = scmp.eq.s32.totalorder %s10, 1
    %p74 = por %p72, %p73
    %p75 = scmp.ne.s32.totalorder %s67, %s70
    %p76 = scmp.eq.s32.totalorder %s10, 0
    %p77 = por %p75, %p76
    %p78 = scmp.ne.s32.totalorder %s67, %s70
    %p79 = scmp.eq.s32.totalorder %s15, 1
    %p80 = por %p78, %p79
    %p81 = scmp.ne.s32.totalorder %s70, %s71
    %p82 = scmp.eq.s32.totalorder %s15, 0
    %p83 = por %p81, %p82
    %p84 = scmp.ne.s32.totalorder %s70, %s71
    %p85 = scmp.eq.s32.totalorder %s16, 1
    %p86 = por %p84, %p85
    %p88 = scmp.ne.s32.totalorder %s71, %s87
    %p89 = scmp.eq.s32.totalorder %s16, 0
    %p90 = por %p88, %p89
    %s91 = ssub.s32 %s10, %s17
    %p92 = scmp.eq.s32.totalorder %s91, 0
    %s94 = sadd.s32 %s93, 1
    %s95 = scalar_select %p92, %s93, %s94
    %p98 = pneg %p92
    %p99 = scmp.eq.s32.totalorder %s10, 1
    %p100 = por %p98, %p99
    %p101 = scmp.ne.s32.totalorder %s93, %s96
    %p102 = scmp.eq.s32.totalorder %s10, 0
    %p103 = por %p101, %p102
    %p104 = scmp.ne.s32.totalorder %s93, %s96
    %p105 = scmp.eq.s32.totalorder %s15, 1
    %p106 = por %p104, %p105
    %p107 = scmp.ne.s32.totalorder %s96, %s97
    %p108 = scmp.eq.s32.totalorder %s15, 0
    %p109 = por %p107, %p108
    %p110 = scmp.ne.s32.totalorder %s96, %s97
    %p111 = scmp.eq.s32.totalorder %s16, 1
    %p112 = por %p110, %p111
    %p114 = scmp.ne.s32.totalorder %s97, %s113
    %p115 = scmp.eq.s32.totalorder %s16, 0
    %p116 = por %p114, %p115
    %p117 = scmp.le.s32.totalorder 1, %s10
    %p118 = scmp.lt.s32.totalorder %s10, 3
    %p119 = pnand %p117, %p118
    %p120 = pneg %p119
    // Predicated region
    $region9: #{_lambda_.2} parent=5 // pred_check
      _
    $region10: #{_lambda_.2} parent=5 // pred_check_branch
      %122 = sbr.rel (%p119) target = $region12
    $region11: #{_lambda_.2} parent=5 // pred_region
      %s123 = ssub.s32 %s10, 1
      // Predicated region
      $region13: #{_lambda_.2} parent=11 // pred_check
        %p124 = pneg %p57
      $region14: #{_lambda_.2} parent=11 // pred_check_branch
        %126 = sbr.rel (%p124) target = $region16
      $region15: #{_lambda_.2} parent=11 // pred_region
        _
      $region16: #{_lambda_.2} parent=11 // pred_fallthru
        _
    $region12: #{_lambda_.2} parent=5 // pred_fallthru
      _
    %p127 = scmp.lt.s32.totalorder %s10, 2
    // Predicated region
    $region17: #{_lambda_.2} parent=5 // pred_check
      %p128 = pneg %p127
    $region18: #{_lambda_.2} parent=5 // pred_check_branch
      %130 = sbr.rel (%p128) target = $region20
    $region19: #{_lambda_.2} parent=5 // pred_region
      // Predicated region
      $region21: #{_lambda_.2} parent=19 // pred_check
        %p131 = pneg %p30
      $region22: #{_lambda_.2} parent=19 // pred_check_branch
        %133 = sbr.rel (%p131) target = $region24
      $region23: #{_lambda_.2} parent=19 // pred_region
        %p134 = scmp.lt.s32.totalorder %s10, 1
        %s135 = scalar_select %p134, %s10, 1
        %s136 = smul.addr %s135, 8
        %s137 = scalar_lea.vmem %s0, %s136
      $region24: #{_lambda_.2} parent=19 // pred_fallthru
        _
    $region20: #{_lambda_.2} parent=5 // pred_fallthru
      _
    %p138 = scmp.le.s32.totalorder 1, %s10
    %p139 = scmp.lt.s32.totalorder %s10, 3
    %p140 = pnand %p138, %p139
    %p141 = pneg %p140
    // Predicated region
    $region25: #{_lambda_.2} parent=5 // pred_check
      _
    $region26: #{_lambda_.2} parent=5 // pred_check_branch
      %143 = sbr.rel (%p140) target = $region28
    $region27: #{_lambda_.2} parent=5 // pred_region
      %s144 = ssub.s32 %s10, 1
      %p145 = scmp.lt.s32.totalorder %s15, 1
      %s146 = scalar_select %p145, %s15, 1
      %s147 = smul.addr %s146, 8
      %s148 = scalar_lea.vmem %s0, %s147
      %p149 = pneg %p36
      %p150 = pneg %p33
      %p151 = pneg %p57
      %p152 = pneg %p54
      %p153 = pneg %p83
      %p154 = pneg %p80
      %p155 = scmp.lt.s32.totalorder %s15, 1
      %s156 = scalar_select %p155, %s15, 1
      %s157 = smul.addr %s156, 8
      %s158 = smul.addr %s157, 8
      %s159 = scalar_lea.vmem %s2, %s158
      %p160 = pneg %p109
      %p161 = pneg %p106
      %p162 = scmp.lt.s32.totalorder %s15, 1
      %s163 = scalar_select %p162, %s15, 1
      %s164 = smul.addr %s163, 8
      %s165 = smul.addr %s164, 8
      %s166 = scalar_lea.vmem %s3, %s165
      %p167 = scmp.lt.s32.totalorder %s15, 1
      %s168 = scalar_select %p167, %s15, 1
      %s169 = smul.addr %s168, 8
      %s170 = scalar_lea.vmem %s0, %s169
      %p171 = scmp.lt.s32.totalorder %s15, 1
      %s172 = scalar_select %p171, %s15, 1
      %s173 = smul.addr %s172, 8
      %s174 = smul.addr %s173, 8
      %s175 = scalar_lea.vmem %s2, %s174
      %p176 = scmp.lt.s32.totalorder %s15, 1
      %s177 = scalar_select %p176, %s15, 1
      %s178 = smul.addr %s177, 8
      %s179 = smul.addr %s178, 8
      %s180 = scalar_lea.vmem %s3, %s179
      %v181 = vld [vmem:[%s170] sm:$0xff]
      %v182 = vld [vmem:[%s1] sm:$0xff]
      %v183 = vld [vmem:[%s1 + $0x8] sm:$0xff]
      %v184 = vld [vmem:[%s1 + $0x10] sm:$0xff]
      %v185 = vld [vmem:[%s1 + $0x18] sm:$0xff]
      %v186 = vld [vmem:[%s1 + $0x20] sm:$0xff]
      %v187 = vld [vmem:[%s1 + $0x28] sm:$0xff]
      %v188 = vld [vmem:[%s1 + $0x30] sm:$0xff]
      %v189 = vld [vmem:[%s1 + $0x38] sm:$0xff]
      %v190 = vld [vmem:[%s1 + $0x40] sm:$0xff]
      %v191 = vld [vmem:[%s1 + $0x48] sm:$0xff]
      %v192 = vld [vmem:[%s1 + $0x50] sm:$0xff]
      %v193 = vld [vmem:[%s1 + $0x58] sm:$0xff]
      %v194 = vld [vmem:[%s1 + $0x60] sm:$0xff]
      %v195 = vld [vmem:[%s1 + $0x68] sm:$0xff]
      %v196 = vld [vmem:[%s1 + $0x70] sm:$0xff]
      %v197 = vld [vmem:[%s1 + $0x78] sm:$0xff]
      %v198 = vld [vmem:[%s1 + $0x80] sm:$0xff]
      %v199 = vld [vmem:[%s1 + $0x88] sm:$0xff]
      %v200 = vld [vmem:[%s1 + $0x90] sm:$0xff]
      %v201 = vld [vmem:[%s1 + $0x98] sm:$0xff]
      %v202 = vld [vmem:[%s1 + $0xa0] sm:$0xff]
      %v203 = vld [vmem:[%s1 + $0xa8] sm:$0xff]
      %v204 = vld [vmem:[%s1 + $0xb0] sm:$0xff]
      %v205 = vld [vmem:[%s1 + $0xb8] sm:$0xff]
      %v206 = vld [vmem:[%s1 + $0xc0] sm:$0xff]
      %v207 = vld [vmem:[%s1 + $0xc8] sm:$0xff]
      %v208 = vld [vmem:[%s1 + $0xd0] sm:$0xff]
      %v209 = vld [vmem:[%s1 + $0xd8] sm:$0xff]
      %v210 = vld [vmem:[%s1 + $0xe0] sm:$0xff]
      %v211 = vld [vmem:[%s1 + $0xe8] sm:$0xff]
      %v212 = vld [vmem:[%s1 + $0xf0] sm:$0xff]
      %v213 = vld [vmem:[%s1 + $0xf8] sm:$0xff]
      %v214 = vld [vmem:[%s1 + $0x100] sm:$0xff]
      %v215 = vld [vmem:[%s1 + $0x108] sm:$0xff]
      %v216 = vld [vmem:[%s1 + $0x110] sm:$0xff]
      %v217 = vld [vmem:[%s1 + $0x118] sm:$0xff]
      %v218 = vld [vmem:[%s1 + $0x120] sm:$0xff]
      %v219 = vld [vmem:[%s1 + $0x128] sm:$0xff]
      %v220 = vld [vmem:[%s1 + $0x130] sm:$0xff]
      %v221 = vld [vmem:[%s1 + $0x138] sm:$0xff]
      %v222 = vld [vmem:[%s1 + $0x140] sm:$0xff]
      %v223 = vld [vmem:[%s1 + $0x148] sm:$0xff]
      %v224 = vld [vmem:[%s1 + $0x150] sm:$0xff]
      %v225 = vld [vmem:[%s1 + $0x158] sm:$0xff]
      %v226 = vld [vmem:[%s1 + $0x160] sm:$0xff]
      %v227 = vld [vmem:[%s1 + $0x168] sm:$0xff]
      %v228 = vld [vmem:[%s1 + $0x170] sm:$0xff]
      %v229 = vld [vmem:[%s1 + $0x178] sm:$0xff]
      %v230 = vld [vmem:[%s1 + $0x180] sm:$0xff]
      %v231 = vld [vmem:[%s1 + $0x188] sm:$0xff]
      %v232 = vld [vmem:[%s1 + $0x190] sm:$0xff]
      %v233 = vld [vmem:[%s1 + $0x198] sm:$0xff]
      %v234 = vld [vmem:[%s1 + $0x1a0] sm:$0xff]
      %v235 = vld [vmem:[%s1 + $0x1a8] sm:$0xff]
      %v236 = vld [vmem:[%s1 + $0x1b0] sm:$0xff]
      %v237 = vld [vmem:[%s1 + $0x1b8] sm:$0xff]
      %v238 = vld [vmem:[%s1 + $0x1c0] sm:$0xff]
      %v239 = vld [vmem:[%s1 + $0x1c8] sm:$0xff]
      %v240 = vld [vmem:[%s1 + $0x1d0] sm:$0xff]
      %v241 = vld [vmem:[%s1 + $0x1d8] sm:$0xff]
      %v242 = vld [vmem:[%s1 + $0x1e0] sm:$0xff]
      %v243 = vld [vmem:[%s1 + $0x1e8] sm:$0xff]
      %v244 = vld [vmem:[%s1 + $0x1f0] sm:$0xff]
      %v245 = vld [vmem:[%s1 + $0x1f8] sm:$0xff]
      %v246 = vld [vmem:[%s1 + $0x200] sm:$0xff]
      %v247 = vld [vmem:[%s1 + $0x208] sm:$0xff]
      %v248 = vld [vmem:[%s1 + $0x210] sm:$0xff]
      %v249 = vld [vmem:[%s1 + $0x218] sm:$0xff]
      %v250 = vld [vmem:[%s1 + $0x220] sm:$0xff]
      %v251 = vld [vmem:[%s1 + $0x228] sm:$0xff]
      %v252 = vld [vmem:[%s1 + $0x230] sm:$0xff]
      %v253 = vld [vmem:[%s1 + $0x238] sm:$0xff]
      %v254 = vld [vmem:[%s1 + $0x240] sm:$0xff]
      %v255 = vld [vmem:[%s1 + $0x248] sm:$0xff]
      %v256 = vld [vmem:[%s1 + $0x250] sm:$0xff]
      %v257 = vld [vmem:[%s1 + $0x258] sm:$0xff]
      %v258 = vld [vmem:[%s1 + $0x260] sm:$0xff]
      %v259 = vld [vmem:[%s1 + $0x268] sm:$0xff]
      %v260 = vld [vmem:[%s1 + $0x270] sm:$0xff]
      %v261 = vld [vmem:[%s1 + $0x278] sm:$0xff]
      %v262 = vld [vmem:[%s1 + $0x280] sm:$0xff]
      %v263 = vld [vmem:[%s1 + $0x288] sm:$0xff]
      %v264 = vld [vmem:[%s1 + $0x290] sm:$0xff]
      %v265 = vld [vmem:[%s1 + $0x298] sm:$0xff]
      %v266 = vld [vmem:[%s1 + $0x2a0] sm:$0xff]
      %v267 = vld [vmem:[%s1 + $0x2a8] sm:$0xff]
      %v268 = vld [vmem:[%s1 + $0x2b0] sm:$0xff]
      %v269 = vld [vmem:[%s1 + $0x2b8] sm:$0xff]
      %v270 = vld [vmem:[%s1 + $0x2c0] sm:$0xff]
      %v271 = vld [vmem:[%s1 + $0x2c8] sm:$0xff]
      %v272 = vld [vmem:[%s1 + $0x2d0] sm:$0xff]
      %v273 = vld [vmem:[%s1 + $0x2d8] sm:$0xff]
      %v274 = vld [vmem:[%s1 + $0x2e0] sm:$0xff]
      %v275 = vld [vmem:[%s1 + $0x2e8] sm:$0xff]
      %v276 = vld [vmem:[%s1 + $0x2f0] sm:$0xff]
      %v277 = vld [vmem:[%s1 + $0x2f8] sm:$0xff]
      %v278 = vld [vmem:[%s1 + $0x300] sm:$0xff]
      %v279 = vld [vmem:[%s1 + $0x308] sm:$0xff]
      %v280 = vld [vmem:[%s1 + $0x310] sm:$0xff]
      %v281 = vld [vmem:[%s1 + $0x318] sm:$0xff]
      %v282 = vld [vmem:[%s1 + $0x320] sm:$0xff]
      %v283 = vld [vmem:[%s1 + $0x328] sm:$0xff]
      %v284 = vld [vmem:[%s1 + $0x330] sm:$0xff]
      %v285 = vld [vmem:[%s1 + $0x338] sm:$0xff]
      %v286 = vld [vmem:[%s1 + $0x340] sm:$0xff]
      %v287 = vld [vmem:[%s1 + $0x348] sm:$0xff]
      %v288 = vld [vmem:[%s1 + $0x350] sm:$0xff]
      %v289 = vld [vmem:[%s1 + $0x358] sm:$0xff]
      %v290 = vld [vmem:[%s1 + $0x360] sm:$0xff]
      %v291 = vld [vmem:[%s1 + $0x368] sm:$0xff]
      %v292 = vld [vmem:[%s1 + $0x370] sm:$0xff]
      %v293 = vld [vmem:[%s1 + $0x378] sm:$0xff]
      %v294 = vld [vmem:[%s1 + $0x380] sm:$0xff]
      %v295 = vld [vmem:[%s1 + $0x388] sm:$0xff]
      %v296 = vld [vmem:[%s1 + $0x390] sm:$0xff]
      %v297 = vld [vmem:[%s1 + $0x398] sm:$0xff]
      %v298 = vld [vmem:[%s1 + $0x3a0] sm:$0xff]
      %v299 = vld [vmem:[%s1 + $0x3a8] sm:$0xff]
      %v300 = vld [vmem:[%s1 + $0x3b0] sm:$0xff]
      %v301 = vld [vmem:[%s1 + $0x3b8] sm:$0xff]
      %v302 = vld [vmem:[%s1 + $0x3c0] sm:$0xff]
      %v303 = vld [vmem:[%s1 + $0x3c8] sm:$0xff]
      %v304 = vld [vmem:[%s1 + $0x3d0] sm:$0xff]
      %v305 = vld [vmem:[%s1 + $0x3d8] sm:$0xff]
      %v306 = vld [vmem:[%s1 + $0x3e0] sm:$0xff]
      %v307 = vld [vmem:[%s1 + $0x3e8] sm:$0xff]
      %v308 = vld [vmem:[%s1 + $0x3f0] sm:$0xff]
      %v309 = vld [vmem:[%s1 + $0x3f8] sm:$0xff]
      %310 = vmatprep.subr.mxu0 %v183
      %311 = vmatpush1.msra.mxu0 %v182
      %312 = vmatprep.subr.mxu0 %v191
      %313 = vmatpush1.msra.mxu0 %v190
      %314 = vmatprep.subr.mxu0 %v199
      %315 = vmatpush1.msra.mxu0 %v198
      %316 = vmatprep.subr.mxu0 %v207
      %317 = vmatpush1.msra.mxu0 %v206
      %318 = vmatprep.subr.mxu0 %v215
      %319 = vmatpush1.msra.mxu0 %v214
      %320 = vmatprep.subr.mxu0 %v223
      %321 = vmatpush1.msra.mxu0 %v222
      %322 = vmatprep.subr.mxu0 %v231
      %323 = vmatpush1.msra.mxu0 %v230
      %324 = vmatprep.subr.mxu0 %v239
      %325 = vmatpush1.msra.mxu0 %v238
      %326 = vmatprep.subr.mxu0 %v247
      %327 = vmatpush1.msra.mxu0 %v246
      %328 = vmatprep.subr.mxu0 %v255
      %329 = vmatpush1.msra.mxu0 %v254
      %330 = vmatprep.subr.mxu0 %v263
      %331 = vmatpush1.msra.mxu0 %v262
      %332 = vmatprep.subr.mxu0 %v271
      %333 = vmatpush1.msra.mxu0 %v270
      %334 = vmatprep.subr.mxu0 %v279
      %335 = vmatpush1.msra.mxu0 %v278
      %336 = vmatprep.subr.mxu0 %v287
      %337 = vmatpush1.msra.mxu0 %v286
      %338 = vmatprep.subr.mxu0 %v295
      %339 = vmatpush1.msra.mxu0 %v294
      %340 = vmatprep.subr.mxu0 %v303
      %341 = vmatpush1.msra.mxu0 %v302
      %342 = vmatprep.subr.mxu0 0.0
      %343 = vmatpush1.msra.mxu0 0.0
      %344 = vmatprep.subr.mxu0 0.0
      %345 = vmatpush1.msra.mxu0 0.0
      %346 = vmatprep.subr.mxu0 0.0
      %347 = vmatpush1.msra.mxu0 0.0
      %348 = vmatprep.subr.mxu0 0.0
      %349 = vmatpush1.msra.mxu0 0.0
      %350 = vmatprep.subr.mxu0 0.0
      %351 = vmatpush1.msra.mxu0 0.0
      %352 = vmatprep.subr.mxu0 0.0
      %353 = vmatpush1.msra.mxu0 0.0
      %354 = vmatprep.subr.mxu0 0.0
      %355 = vmatpush1.msra.mxu0 0.0
      %356 = vmatprep.subr.mxu0 0.0
      %357 = vmatpush1.msra.mxu0 0.0
      %358 = vmatprep.subr.mxu0 0.0
      %359 = vmatpush1.msra.mxu0 0.0
      %360 = vmatprep.subr.mxu0 0.0
      %361 = vmatpush1.msra.mxu0 0.0
      %362 = vmatprep.subr.mxu0 0.0
      %363 = vmatpush1.msra.mxu0 0.0
      %364 = vmatprep.subr.mxu0 0.0
      %365 = vmatpush1.msra.mxu0 0.0
      %366 = vmatprep.subr.mxu0 0.0
      %367 = vmatpush1.msra.mxu0 0.0
      %368 = vmatprep.subr.mxu0 0.0
      %369 = vmatpush1.msra.mxu0 0.0
      %370 = vmatprep.subr.mxu0 0.0
      %371 = vmatpush1.msra.mxu0 0.0
      %372 = vmatprep.subr.mxu0 0.0
      %373 = vmatpush1.msra.mxu0 0.0
      %374 = vmatprep.mubr.f32.mxu0 0.0
      %375 = vmatmul.mubr.f32.gmra.mrb[0].mxu0 %v181
      %v376 = vpop.f32.mrb[0].mxu0
      %v377 = vadd.f32 0.0, %v376
      %v378 = vpop.f32.mrb[0].mxu0
      %v379 = vadd.f32 0.0, %v378
      %380 = vdwg.mxu0
      %381 = vmatprep.subr.mxu0 %v185
      %382 = vmatpush1.msra.mxu0 %v184
      %383 = vmatprep.subr.mxu0 %v193
      %384 = vmatpush1.msra.mxu0 %v192
      %385 = vmatprep.subr.mxu0 %v201
      %386 = vmatpush1.msra.mxu0 %v200
      %387 = vmatprep.subr.mxu0 %v209
      %388 = vmatpush1.msra.mxu0 %v208
      %389 = vmatprep.subr.mxu0 %v217
      %390 = vmatpush1.msra.mxu0 %v216
      %391 = vmatprep.subr.mxu0 %v225
      %392 = vmatpush1.msra.mxu0 %v224
      %393 = vmatprep.subr.mxu0 %v233
      %394 = vmatpush1.msra.mxu0 %v232
      %395 = vmatprep.subr.mxu0 %v241
      %396 = vmatpush1.msra.mxu0 %v240
      %397 = vmatprep.subr.mxu0 %v249
      %398 = vmatpush1.msra.mxu0 %v248
      %399 = vmatprep.subr.mxu0 %v257
      %400 = vmatpush1.msra.mxu0 %v256
      %401 = vmatprep.subr.mxu0 %v265
      %402 = vmatpush1.msra.mxu0 %v264
      %403 = vmatprep.subr.mxu0 %v273
      %404 = vmatpush1.msra.mxu0 %v272
      %405 = vmatprep.subr.mxu0 %v281
      %406 = vmatpush1.msra.mxu0 %v280
      %407 = vmatprep.subr.mxu0 %v289
      %408 = vmatpush1.msra.mxu0 %v288
      %409 = vmatprep.subr.mxu0 %v297
      %410 = vmatpush1.msra.mxu0 %v296
      %411 = vmatprep.subr.mxu0 %v305
      %412 = vmatpush1.msra.mxu0 %v304
      %413 = vmatprep.subr.mxu0 0.0
      %414 = vmatpush1.msra.mxu0 0.0
      %415 = vmatprep.subr.mxu0 0.0
      %416 = vmatpush1.msra.mxu0 0.0
      %417 = vmatprep.subr.mxu0 0.0
      %418 = vmatpush1.msra.mxu0 0.0
      %419 = vmatprep.subr.mxu0 0.0
      %420 = vmatpush1.msra.mxu0 0.0
      %421 = vmatprep.subr.mxu0 0.0
      %422 = vmatpush1.msra.mxu0 0.0
      %423 = vmatprep.subr.mxu0 0.0
      %424 = vmatpush1.msra.mxu0 0.0
      %425 = vmatprep.subr.mxu0 0.0
      %426 = vmatpush1.msra.mxu0 0.0
      %427 = vmatprep.subr.mxu0 0.0
      %428 = vmatpush1.msra.mxu0 0.0
      %429 = vmatprep.subr.mxu0 0.0
      %430 = vmatpush1.msra.mxu0 0.0
      %431 = vmatprep.subr.mxu0 0.0
      %432 = vmatpush1.msra.mxu0 0.0
      %433 = vmatprep.subr.mxu0 0.0
      %434 = vmatpush1.msra.mxu0 0.0
      %435 = vmatprep.subr.mxu0 0.0
      %436 = vmatpush1.msra.mxu0 0.0
      %437 = vmatprep.subr.mxu0 0.0
      %438 = vmatpush1.msra.mxu0 0.0
      %439 = vmatprep.subr.mxu0 0.0
      %440 = vmatpush1.msra.mxu0 0.0
      %441 = vmatprep.subr.mxu0 0.0
      %442 = vmatpush1.msra.mxu0 0.0
      %443 = vmatprep.subr.mxu0 0.0
      %444 = vmatpush1.msra.mxu0 0.0
      %445 = vmatprep.mubr.f32.mxu0 0.0
      %446 = vmatmul.mubr.f32.gmra.mrb[0].mxu0 %v181
      %v447 = vpop.f32.mrb[0].mxu0
      %v448 = vadd.f32 0.0, %v447
      %v449 = vpop.f32.mrb[0].mxu0
      %v450 = vadd.f32 0.0, %v449
      %451 = vdwg.mxu0
      %452 = vmatprep.subr.mxu0 %v187
      %453 = vmatpush1.msra.mxu0 %v186
      %454 = vmatprep.subr.mxu0 %v195
      %455 = vmatpush1.msra.mxu0 %v194
      %456 = vmatprep.subr.mxu0 %v203
      %457 = vmatpush1.msra.mxu0 %v202
      %458 = vmatprep.subr.mxu0 %v211
      %459 = vmatpush1.msra.mxu0 %v210
      %460 = vmatprep.subr.mxu0 %v219
      %461 = vmatpush1.msra.mxu0 %v218
      %462 = vmatprep.subr.mxu0 %v227
      %463 = vmatpush1.msra.mxu0 %v226
      %464 = vmatprep.subr.mxu0 %v235
      %465 = vmatpush1.msra.mxu0 %v234
      %466 = vmatprep.subr.mxu0 %v243
      %467 = vmatpush1.msra.mxu0 %v242
      %468 = vmatprep.subr.mxu0 %v251
      %469 = vmatpush1.msra.mxu0 %v250
      %470 = vmatprep.subr.mxu0 %v259
      %471 = vmatpush1.msra.mxu0 %v258
      %472 = vmatprep.subr.mxu0 %v267
      %473 = vmatpush1.msra.mxu0 %v266
      %474 = vmatprep.subr.mxu0 %v275
      %475 = vmatpush1.msra.mxu0 %v274
      %476 = vmatprep.subr.mxu0 %v283
      %477 = vmatpush1.msra.mxu0 %v282
      %478 = vmatprep.subr.mxu0 %v291
      %479 = vmatpush1.msra.mxu0 %v290
      %480 = vmatprep.subr.mxu0 %v299
      %481 = vmatpush1.msra.mxu0 %v298
      %482 = vmatprep.subr.mxu0 %v307
      %483 = vmatpush1.msra.mxu0 %v306
      %484 = vmatprep.subr.mxu0 0.0
      %485 = vmatpush1.msra.mxu0 0.0
      %486 = vmatprep.subr.mxu0 0.0
      %487 = vmatpush1.msra.mxu0 0.0
      %488 = vmatprep.subr.mxu0 0.0
      %489 = vmatpush1.msra.mxu0 0.0
      %490 = vmatprep.subr.mxu0 0.0
      %491 = vmatpush1.msra.mxu0 0.0
      %492 = vmatprep.subr.mxu0 0.0
      %493 = vmatpush1.msra.mxu0 0.0
      %494 = vmatprep.subr.mxu0 0.0
      %495 = vmatpush1.msra.mxu0 0.0
      %496 = vmatprep.subr.mxu0 0.0
      %497 = vmatpush1.msra.mxu0 0.0
      %498 = vmatprep.subr.mxu0 0.0
      %499 = vmatpush1.msra.mxu0 0.0
      %500 = vmatprep.subr.mxu0 0.0
      %501 = vmatpush1.msra.mxu0 0.0
      %502 = vmatprep.subr.mxu0 0.0
      %503 = vmatpush1.msra.mxu0 0.0
      %504 = vmatprep.subr.mxu0 0.0
      %505 = vmatpush1.msra.mxu0 0.0
      %506 = vmatprep.subr.mxu0 0.0
      %507 = vmatpush1.msra.mxu0 0.0
      %508 = vmatprep.subr.mxu0 0.0
      %509 = vmatpush1.msra.mxu0 0.0
      %510 = vmatprep.subr.mxu0 0.0
      %511 = vmatpush1.msra.mxu0 0.0
      %512 = vmatprep.subr.mxu0 0.0
      %513 = vmatpush1.msra.mxu0 0.0
      %514 = vmatprep.subr.mxu0 0.0
      %515 = vmatpush1.msra.mxu0 0.0
      %516 = vmatprep.mubr.f32.mxu0 0.0
      %517 = vmatmul.mubr.f32.gmra.mrb[0].mxu0 %v181
      %v518 = vpop.f32.mrb[0].mxu0
      %v519 = vadd.f32 0.0, %v518
      %v520 = vpop.f32.mrb[0].mxu0
      %v521 = vadd.f32 0.0, %v520
      %522 = vdwg.mxu0
      %523 = vmatprep.subr.mxu0 %v189
      %524 = vmatpush1.msra.mxu0 %v188
      %525 = vmatprep.subr.mxu0 %v197
      %526 = vmatpush1.msra.mxu0 %v196
      %527 = vmatprep.subr.mxu0 %v205
      %528 = vmatpush1.msra.mxu0 %v204
      %529 = vmatprep.subr.mxu0 %v213
      %530 = vmatpush1.msra.mxu0 %v212
      %531 = vmatprep.subr.mxu0 %v221
      %532 = vmatpush1.msra.mxu0 %v220
      %533 = vmatprep.subr.mxu0 %v229
      %534 = vmatpush1.msra.mxu0 %v228
      %535 = vmatprep.subr.mxu0 %v237
      %536 = vmatpush1.msra.mxu0 %v236
      %537 = vmatprep.subr.mxu0 %v245
      %538 = vmatpush1.msra.mxu0 %v244
      %539 = vmatprep.subr.mxu0 %v253
      %540 = vmatpush1.msra.mxu0 %v252
      %541 = vmatprep.subr.mxu0 %v261
      %542 = vmatpush1.msra.mxu0 %v260
      %543 = vmatprep.subr.mxu0 %v269
      %544 = vmatpush1.msra.mxu0 %v268
      %545 = vmatprep.subr.mxu0 %v277
      %546 = vmatpush1.msra.mxu0 %v276
      %547 = vmatprep.subr.mxu0 %v285
      %548 = vmatpush1.msra.mxu0 %v284
      %549 = vmatprep.subr.mxu0 %v293
      %550 = vmatpush1.msra.mxu0 %v292
      %551 = vmatprep.subr.mxu0 %v301
      %552 = vmatpush1.msra.mxu0 %v300
      %553 = vmatprep.subr.mxu0 %v309
      %554 = vmatpush1.msra.mxu0 %v308
      %555 = vmatprep.subr.mxu0 0.0
      %556 = vmatpush1.msra.mxu0 0.0
      %557 = vmatprep.subr.mxu0 0.0
      %558 = vmatpush1.msra.mxu0 0.0
      %559 = vmatprep.subr.mxu0 0.0
      %560 = vmatpush1.msra.mxu0 0.0
      %561 = vmatprep.subr.mxu0 0.0
      %562 = vmatpush1.msra.mxu0 0.0
      %563 = vmatprep.subr.mxu0 0.0
      %564 = vmatpush1.msra.mxu0 0.0
      %565 = vmatprep.subr.mxu0 0.0
      %566 = vmatpush1.msra.mxu0 0.0
      %567 = vmatprep.subr.mxu0 0.0
      %568 = vmatpush1.msra.mxu0 0.0
      %569 = vmatprep.subr.mxu0 0.0
      %570 = vmatpush1.msra.mxu0 0.0
      %571 = vmatprep.subr.mxu0 0.0
      %572 = vmatpush1.msra.mxu0 0.0
      %573 = vmatprep.subr.mxu0 0.0
      %574 = vmatpush1.msra.mxu0 0.0
      %575 = vmatprep.subr.mxu0 0.0
      %576 = vmatpush1.msra.mxu0 0.0
      %577 = vmatprep.subr.mxu0 0.0
      %578 = vmatpush1.msra.mxu0 0.0
      %579 = vmatprep.subr.mxu0 0.0
      %580 = vmatpush1.msra.mxu0 0.0
      %581 = vmatprep.subr.mxu0 0.0
      %582 = vmatpush1.msra.mxu0 0.0
      %583 = vmatprep.subr.mxu0 0.0
      %584 = vmatpush1.msra.mxu0 0.0
      %585 = vmatprep.subr.mxu0 0.0
      %586 = vmatpush1.msra.mxu0 0.0
      %587 = vmatprep.mubr.f32.mxu0 0.0
      %588 = vmatmul.mubr.f32.gmra.mrb[0].mxu0 %v181
      %v589 = vpop.f32.mrb[0].mxu0
      %v590 = vadd.f32 0.0, %v589
      %v591 = vpop.f32.mrb[0].mxu0
      %v592 = vadd.f32 0.0, %v591
      %593 = vdwg.mxu0
      %v594 = vadd.f32 %v377, 0.0
      %v595 = vadd.f32 %v379, 0.0
      %v596 = vadd.f32 %v448, 0.0
      %v597 = vadd.f32 %v450, 0.0
      %v598 = vadd.f32 %v519, 0.0
      %v599 = vadd.f32 %v521, 0.0
      %v600 = vadd.f32 %v590, 0.0
      %v601 = vadd.f32 %v592, 0.0
      %602 = vst [vmem:[%s175] sm:$0xff] %v594
      %603 = vst [vmem:[%s175 + $0x8] sm:$0xff] %v595
      %604 = vst [vmem:[%s175 + $0x10] sm:$0xff] %v596
      %605 = vst [vmem:[%s175 + $0x18] sm:$0xff] %v597
      %606 = vst [vmem:[%s175 + $0x20] sm:$0xff] %v598
      %607 = vst [vmem:[%s175 + $0x28] sm:$0xff] %v599
      %608 = vst [vmem:[%s175 + $0x30] sm:$0xff] %v600
      %609 = vst [vmem:[%s175 + $0x38] sm:$0xff] %v601
      %v610 = vmul.f32 %v377, %v377
      %v611 = vmul.f32 %v379, %v379
      %v612 = vmul.f32 %v448, %v448
      %v613 = vmul.f32 %v450, %v450
      %v614 = vmul.f32 %v519, %v519
      %v615 = vmul.f32 %v521, %v521
      %v616 = vmul.f32 %v590, %v590
      %v617 = vmul.f32 %v592, %v592
      %v618 = vadd.f32 %v610, 0.0
      %v619 = vadd.f32 %v611, 0.0
      %v620 = vadd.f32 %v612, 0.0
      %v621 = vadd.f32 %v613, 0.0
      %v622 = vadd.f32 %v614, 0.0
      %v623 = vadd.f32 %v615, 0.0
      %v624 = vadd.f32 %v616, 0.0
      %v625 = vadd.f32 %v617, 0.0
      %626 = vst [vmem:[%s180] sm:$0xff] %v618
      %627 = vst [vmem:[%s180 + $0x8] sm:$0xff] %v619
      %628 = vst [vmem:[%s180 + $0x10] sm:$0xff] %v620
      %629 = vst [vmem:[%s180 + $0x18] sm:$0xff] %v621
      %630 = vst [vmem:[%s180 + $0x20] sm:$0xff] %v622
      %631 = vst [vmem:[%s180 + $0x28] sm:$0xff] %v623
      %632 = vst [vmem:[%s180 + $0x30] sm:$0xff] %v624
      %633 = vst [vmem:[%s180 + $0x38] sm:$0xff] %v625
      %p634 = scmp.lt.s32.totalorder %s15, 1
      %s635 = scalar_select %p634, %s15, 1
      %s636 = smul.addr %s635, 8
      %s637 = smul.addr %s636, 8
      %s638 = scalar_lea.vmem %s2, %s637
      %p639 = scmp.lt.s32.totalorder %s15, 1
      %s640 = scalar_select %p639, %s15, 1
      %s641 = smul.addr %s640, 8
      %s642 = smul.addr %s641, 8
      %s643 = scalar_lea.vmem %s3, %s642
      // Predicated region
      $region29: #{_lambda_.2} parent=27 // pred_check
        %p644 = pneg %p80
      $region30: #{_lambda_.2} parent=27 // pred_check_branch
        %646 = sbr.rel (%p644) target = $region32
      $region31: #{_lambda_.2} parent=27 // pred_region
        _
      $region32: #{_lambda_.2} parent=27 // pred_fallthru
        _
      // Predicated region
      $region33: #{_lambda_.2} parent=27 // pred_check
        %p647 = pneg %p106
      $region34: #{_lambda_.2} parent=27 // pred_check_branch
        %649 = sbr.rel (%p647) target = $region36
      $region35: #{_lambda_.2} parent=27 // pred_region
        _
      $region36: #{_lambda_.2} parent=27 // pred_fallthru
        _
    $region28: #{_lambda_.2} parent=5 // pred_fallthru
      _
    %p650 = scmp.le.s32.totalorder 2, %s10
    // Predicated region
    $region37: #{_lambda_.2} parent=5 // pred_check
      %p651 = pneg %p650
    $region38: #{_lambda_.2} parent=5 // pred_check_branch
      %653 = sbr.rel (%p651) target = $region40
    $region39: #{_lambda_.2} parent=5 // pred_region
      %s654 = ssub.s32 %s10, 2
      // Predicated region
      $region41: #{_lambda_.2} parent=39 // pred_check
        %p655 = pneg %p86
      $region42: #{_lambda_.2} parent=39 // pred_check_branch
        %657 = sbr.rel (%p655) target = $region44
      $region43: #{_lambda_.2} parent=39 // pred_region
        %p658 = scmp.lt.s32.totalorder %s16, 1
        %s659 = scalar_select %p658, %s16, 1
        %s660 = smul.addr %s659, 8
        %s661 = smul.addr %s660, 8
        %s662 = scalar_lea.vmem %s2, %s661
      $region44: #{_lambda_.2} parent=39 // pred_fallthru
        _
      // Predicated region
      $region45: #{_lambda_.2} parent=39 // pred_check
        %p663 = pneg %p112
      $region46: #{_lambda_.2} parent=39 // pred_check_branch
        %665 = sbr.rel (%p663) target = $region48
      $region47: #{_lambda_.2} parent=39 // pred_region
        %p666 = scmp.lt.s32.totalorder %s16, 1
        %s667 = scalar_select %p666, %s16, 1
        %s668 = smul.addr %s667, 8
        %s669 = smul.addr %s668, 8
        %s670 = scalar_lea.vmem %s3, %s669
      $region48: #{_lambda_.2} parent=39 // pred_fallthru
        _
    $region40: #{_lambda_.2} parent=5 // pred_fallthru
      _
  $region6: #{_lambda_.2} parent=0 // loop_footer
    %s14 = sadd.s32 1, %s10
  $region7: #{_lambda_.2} parent=0 // loop_footer_branch
    %9 = sbr.rel target = $region3
  $region8: #{_lambda_.2} parent=0 // loop_exit
    _

// kernel: _lambda_.3
$region0: #{_lambda_.3}
  #allocation0 [shape = 'u32[]', space=smem, size = 0x4, offset = 0x4, fixed_abs, tag = 'smem constant byte address 0x4 - core index']
  #allocation1 [shape = 'u32[144,128]{1,0:T(1,128)}', space=vmem, size = 0x12000, scoped, tag = 'internal scratch']
  %s0 = inlined_call_operand.vmem [shape: f32[2,16,65], index: 0, kind: input, shape index: {}]
  %s1 = inlined_call_operand.vmem [shape: f32[8,65,64], index: 1, kind: input, shape index: {}]
  %s2 = inlined_call_operand.vmem [shape: f32[2,8,16,64], index: 2, kind: output, shape index: {}]
  %s3 = sld [smem:[#allocation0]]
  $region41: #{_lambda_.3} parent=0
    _
  %s5 = ssub.s32 1, %s3
  %s6 = scalar_select 0, %s5, %s3
  loop: start=0, step=1, limit=18
  $region2: #{_lambda_.3} parent=0 // loop_pre_header
    _
  $region3: #{_lambda_.3} parent=0 // loop_header
    %s8 = sphi 0, %s12
    %p9 = scmp.ge.s32.totalorder %s8, 18
    %s15 = sphi 0, %s34
    %s16 = sphi 0, %s30
    %s17 = sphi 0, %s26
    %s18 = sphi 0, %s15
    %s19 = sphi 0, %s16
    %s20 = sphi 0, %s17
    %s21 = sphi 0, %s18
    %s22 = sphi 0, %s19
    %s23 = sphi 0, %s20
    %s39 = sphi 0, %s41
    %s42 = sphi 0, %s39
    %s43 = sphi 0, %s42
    %s59 = sphi 0, %s43
    %s65 = sphi 0, %s67
    %s68 = sphi 0, %s65
    %s69 = sphi 0, %s68
    %s85 = sphi 0, %s69
    %s95 = sphi 0, %s97
    %s98 = sphi 0, %s95
    %s99 = sphi 0, %s98
    %s115 = sphi 0, %s99
  $region4: #{_lambda_.3} parent=0 // loop_header_branch
    %11 = sbr.rel (%p9) target = $region8
  $region5: #{_lambda_.3} parent=0 // loop_body
    %s13 = ssub.s32 %s8, 1
    %s14 = ssub.s32 %s8, 2
    %s24 = sadd.s32 1, %s17
    %p25 = scmp.ge.s32.totalorder %s24, 8
    %s26 = scalar_select %p25, 0, %s24
    %s27 = sadd.s32 1, %s16
    %s28 = scalar_select %p25, %s27, %s16
    %p29 = scmp.ge.s32.totalorder %s28, 1
    %s30 = scalar_select %p29, 0, %s28
    %s31 = sadd.s32 1, %s15
    %s32 = scalar_select %p29, %s31, %s15
    %p33 = scmp.ge.s32.totalorder %s32, 2
    %s34 = scalar_select %p33, 0, %s32
    %s35 = ssub.s32 %s15, %s34
    %s36 = ssub.s32 %s16, %s30
    %s37 = sor.u32 %s35, %s36
    %p38 = scmp.eq.s32.totalorder %s37, 0
    %s40 = sadd.s32 %s39, 1
    %s41 = scalar_select %p38, %s39, %s40
    %p44 = pneg %p38
    %p45 = scmp.eq.s32.totalorder %s8, 15
    %p46 = por %p44, %p45
    %p47 = scmp.ne.s32.totalorder %s39, %s42
    %p48 = scmp.eq.s32.totalorder %s8, 0
    %p49 = por %p47, %p48
    %p50 = scmp.ne.s32.totalorder %s39, %s42
    %p51 = scmp.eq.s32.totalorder %s13, 15
    %p52 = por %p50, %p51
    %p53 = scmp.ne.s32.totalorder %s42, %s43
    %p54 = scmp.eq.s32.totalorder %s13, 0
    %p55 = por %p53, %p54
    %p56 = scmp.ne.s32.totalorder %s42, %s43
    %p57 = scmp.eq.s32.totalorder %s14, 15
    %p58 = por %p56, %p57
    %p60 = scmp.ne.s32.totalorder %s43, %s59
    %p61 = scmp.eq.s32.totalorder %s14, 0
    %p62 = por %p60, %p61
    %s63 = ssub.s32 %s17, %s26
    %p64 = scmp.eq.s32.totalorder %s63, 0
    %s66 = sadd.s32 %s65, 1
    %s67 = scalar_select %p64, %s65, %s66
    %p70 = pneg %p64
    %p71 = scmp.eq.s32.totalorder %s8, 15
    %p72 = por %p70, %p71
    %p73 = scmp.ne.s32.totalorder %s65, %s68
    %p74 = scmp.eq.s32.totalorder %s8, 0
    %p75 = por %p73, %p74
    %p76 = scmp.ne.s32.totalorder %s65, %s68
    %p77 = scmp.eq.s32.totalorder %s13, 15
    %p78 = por %p76, %p77
    %p79 = scmp.ne.s32.totalorder %s68, %s69
    %p80 = scmp.eq.s32.totalorder %s13, 0
    %p81 = por %p79, %p80
    %p82 = scmp.ne.s32.totalorder %s68, %s69
    %p83 = scmp.eq.s32.totalorder %s14, 15
    %p84 = por %p82, %p83
    %p86 = scmp.ne.s32.totalorder %s69, %s85
    %p87 = scmp.eq.s32.totalorder %s14, 0
    %p88 = por %p86, %p87
    %s89 = ssub.s32 %s15, %s34
    %s90 = ssub.s32 %s17, %s26
    %s91 = sor.u32 %s89, %s90
    %s92 = ssub.s32 %s16, %s30
    %s93 = sor.u32 %s91, %s92
    %p94 = scmp.eq.s32.totalorder %s93, 0
    %s96 = sadd.s32 %s95, 1
    %s97 = scalar_select %p94, %s95, %s96
    %p100 = pneg %p94
    %p101 = scmp.eq.s32.totalorder %s8, 15
    %p102 = por %p100, %p101
    %p103 = scmp.ne.s32.totalorder %s95, %s98
    %p104 = scmp.eq.s32.totalorder %s8, 0
    %p105 = por %p103, %p104
    %p106 = scmp.ne.s32.totalorder %s95, %s98
    %p107 = scmp.eq.s32.totalorder %s13, 15
    %p108 = por %p106, %p107
    %p109 = scmp.ne.s32.totalorder %s98, %s99
    %p110 = scmp.eq.s32.totalorder %s13, 0
    %p111 = por %p109, %p110
    %p112 = scmp.ne.s32.totalorder %s98, %s99
    %p113 = scmp.eq.s32.totalorder %s14, 15
    %p114 = por %p112, %p113
    %p116 = scmp.ne.s32.totalorder %s99, %s115
    %p117 = scmp.eq.s32.totalorder %s14, 0
    %p118 = por %p116, %p117
    %p119 = scmp.le.s32.totalorder 1, %s8
    %p120 = scmp.lt.s32.totalorder %s8, 17
    %p121 = pnand %p119, %p120
    %p122 = pneg %p121
    // Predicated region
    $region9: #{_lambda_.3} parent=5 // pred_check
      _
    $region10: #{_lambda_.3} parent=5 // pred_check_branch
      %124 = sbr.rel (%p121) target = $region12
    $region11: #{_lambda_.3} parent=5 // pred_region
      %s125 = ssub.s32 %s8, 1
    $region12: #{_lambda_.3} parent=5 // pred_fallthru
      _
    %p126 = scmp.lt.s32.totalorder %s8, 16
    // Predicated region
    $region13: #{_lambda_.3} parent=5 // pred_check
      %p127 = pneg %p126
    $region14: #{_lambda_.3} parent=5 // pred_check_branch
      %129 = sbr.rel (%p127) target = $region16
    $region15: #{_lambda_.3} parent=5 // pred_region
      // Predicated region
      $region17: #{_lambda_.3} parent=15 // pred_check
        %p130 = pneg %p49
      $region18: #{_lambda_.3} parent=15 // pred_check_branch
        %132 = sbr.rel (%p130) target = $region20
      $region19: #{_lambda_.3} parent=15 // pred_region
        %s133 = smul.u32 2, %s16
        %p134 = scmp.lt.s32.totalorder %s15, 1
        %s135 = scalar_select %p134, %s15, 1
        %p136 = scmp.lt.s32.totalorder %s133, 1
        %s137 = scalar_select %p136, %s133, 1
        %s138 = smul.addr %s135, 2
        %s139 = sadd.s32 %s137, %s138
        %s140 = smul.addr %s139, 8
        %s141 = scalar_lea.vmem %s0, %s140
        %s142 = smul.u32 2, %s16
      $region20: #{_lambda_.3} parent=15 // pred_fallthru
        _
      // Predicated region
      $region21: #{_lambda_.3} parent=15 // pred_check
        %p143 = pneg %p75
      $region22: #{_lambda_.3} parent=15 // pred_check_branch
        %145 = sbr.rel (%p143) target = $region24
      $region23: #{_lambda_.3} parent=15 // pred_region
        %p146 = scmp.lt.s32.totalorder %s17, 7
        %s147 = scalar_select %p146, %s17, 7
        %s148 = smul.addr %s147, 9
        %s149 = smul.addr %s148, 8
        %s150 = scalar_lea.vmem %s1, %s149
      $region24: #{_lambda_.3} parent=15 // pred_fallthru
        _
    $region16: #{_lambda_.3} parent=5 // pred_fallthru
      _
    %p151 = scmp.le.s32.totalorder 1, %s8
    %p152 = scmp.lt.s32.totalorder %s8, 17
    %p153 = pnand %p151, %p152
    %p154 = pneg %p153
    // Predicated region
    $region25: #{_lambda_.3} parent=5 // pred_check
      _
    $region26: #{_lambda_.3} parent=5 // pred_check_branch
      %156 = sbr.rel (%p153) target = $region28
    $region27: #{_lambda_.3} parent=5 // pred_region
      %s157 = ssub.s32 %s8, 1
      %s158 = smul.u32 2, %s19
      %p159 = scmp.lt.s32.totalorder %s18, 1
      %s160 = scalar_select %p159, %s18, 1
      %p161 = scmp.lt.s32.totalorder %s158, 1
      %s162 = scalar_select %p161, %s158, 1
      %s163 = smul.addr %s160, 2
      %s164 = sadd.s32 %s162, %s163
      %s165 = smul.addr %s164, 8
      %s166 = scalar_lea.vmem %s0, %s165
      %p167 = pneg %p55
      %p168 = pneg %p52
      %p169 = scmp.lt.s32.totalorder %s20, 7
      %s170 = scalar_select %p169, %s20, 7
      %s171 = smul.addr %s170, 9
      %s172 = smul.addr %s171, 8
      %s173 = scalar_lea.vmem %s1, %s172
      %p174 = pneg %p81
      %p175 = pneg %p78
      %p176 = pneg %p111
      %p177 = pneg %p108
      %s178 = smul.u32 2, %s19
      %p179 = scmp.lt.s32.totalorder %s18, 1
      %s180 = scalar_select %p179, %s18, 1
      %p181 = scmp.lt.s32.totalorder %s20, 7
      %s182 = scalar_select %p181, %s20, 7
      %p183 = scmp.lt.s32.totalorder %s178, 1
      %s184 = scalar_select %p183, %s178, 1
      %s185 = smul.addr %s182, 2
      %s186 = sadd.s32 %s184, %s185
      %s187 = smul.addr %s180, 16
      %s188 = sadd.s32 %s186, %s187
      %s189 = smul.addr %s188, 8
      %s190 = scalar_lea.vmem %s2, %s189
      %s191 = smul.u32 2, %s19
      %p192 = scmp.lt.s32.totalorder %s18, 1
      %s193 = scalar_select %p192, %s18, 1
      %p194 = scmp.lt.s32.totalorder %s191, 1
      %s195 = scalar_select %p194, %s191, 1
      %s196 = smul.addr %s193, 2
      %s197 = sadd.s32 %s195, %s196
      %s198 = smul.addr %s197, 8
      %s199 = scalar_lea.vmem %s0, %s198
      %s200 = smul.u32 2, %s19
      %p201 = scmp.lt.s32.totalorder %s20, 7
      %s202 = scalar_select %p201, %s20, 7
      %s203 = smul.addr %s202, 9
      %s204 = smul.addr %s203, 8
      %s205 = scalar_lea.vmem %s1, %s204
      %s206 = smul.u32 2, %s19
      %p207 = scmp.lt.s32.totalorder %s18, 1
      %s208 = scalar_select %p207, %s18, 1
      %p209 = scmp.lt.s32.totalorder %s20, 7
      %s210 = scalar_select %p209, %s20, 7
      %p211 = scmp.lt.s32.totalorder %s206, 1
      %s212 = scalar_select %p211, %s206, 1
      %s213 = smul.addr %s210, 2
      %s214 = sadd.s32 %s212, %s213
      %s215 = smul.addr %s208, 16
      %s216 = sadd.s32 %s214, %s215
      %s217 = smul.addr %s216, 8
      %s218 = scalar_lea.vmem %s2, %s217
      %s219 = smul.u32 2, %s19
      %v220 = vld [vmem:[%s199] sm:$0xff]
      %v221 = vld [vmem:[%s199 + $0x8] sm:$0xff]
      %v222 = vld [vmem:[%s205] sm:$0xff]
      %v223 = vld [vmem:[%s205 + $0x8] sm:$0xff]
      %v224 = vld [vmem:[%s205 + $0x10] sm:$0xff]
      %v225 = vld [vmem:[%s205 + $0x18] sm:$0xff]
      %v226 = vld [vmem:[%s205 + $0x20] sm:$0xff]
      %v227 = vld [vmem:[%s205 + $0x28] sm:$0xff]
      %v228 = vld [vmem:[%s205 + $0x30] sm:$0xff]
      %v229 = vld [vmem:[%s205 + $0x38] sm:$0xff]
      %v230 = vld [vmem:[%s205 + $0x40] sm:$0x1]
      %vm231 = vcmask 531456
      %v233 = vsel %vm231, %v220, 0
      %v236 = vsel %vm231, %v221, 0
      %vm238 = vcmask 1040384
      %v240 = vsel %vm238, %v230, 0
      %242 = vmatprep.subr.mxu0 0.0
      %243 = vmatpush1.msra.mxu0 %v222
      %244 = vmatprep.subr.mxu0 0.0
      %245 = vmatpush1.msra.mxu0 %v223
      %246 = vmatprep.subr.mxu0 0.0
      %247 = vmatpush1.msra.mxu0 %v224
      %248 = vmatprep.subr.mxu0 0.0
      %249 = vmatpush1.msra.mxu0 %v225
      %250 = vmatprep.subr.mxu0 0.0
      %251 = vmatpush1.msra.mxu0 %v226
      %252 = vmatprep.subr.mxu0 0.0
      %253 = vmatpush1.msra.mxu0 %v227
      %254 = vmatprep.subr.mxu0 0.0
      %255 = vmatpush1.msra.mxu0 %v228
      %256 = vmatprep.subr.mxu0 0.0
      %257 = vmatpush1.msra.mxu0 %v229
      %258 = vmatprep.subr.mxu0 0.0
      %259 = vmatpush1.msra.mxu0 %v240
      %260 = vmatprep.subr.mxu0 0.0
      %261 = vmatpush1.msra.mxu0 0.0
      %262 = vmatprep.subr.mxu0 0.0
      %263 = vmatpush1.msra.mxu0 0.0
      %264 = vmatprep.subr.mxu0 0.0
      %265 = vmatpush1.msra.mxu0 0.0
      %266 = vmatprep.subr.mxu0 0.0
      %267 = vmatpush1.msra.mxu0 0.0
      %268 = vmatprep.subr.mxu0 0.0
      %269 = vmatpush1.msra.mxu0 0.0
      %270 = vmatprep.subr.mxu0 0.0
      %271 = vmatpush1.msra.mxu0 0.0
      %272 = vmatprep.subr.mxu0 0.0
      %273 = vmatpush1.msra.mxu0 0.0
      %274 = vmatprep.subr.mxu0 0.0
      %275 = vmatpush1.msra.mxu0 0.0
      %276 = vmatprep.subr.mxu0 0.0
      %277 = vmatpush1.msra.mxu0 0.0
      %278 = vmatprep.subr.mxu0 0.0
      %279 = vmatpush1.msra.mxu0 0.0
      %280 = vmatprep.subr.mxu0 0.0
      %281 = vmatpush1.msra.mxu0 0.0
      %282 = vmatprep.subr.mxu0 0.0
      %283 = vmatpush1.msra.mxu0 0.0
      %284 = vmatprep.subr.mxu0 0.0
      %285 = vmatpush1.msra.mxu0 0.0
      %286 = vmatprep.subr.mxu0 0.0
      %287 = vmatpush1.msra.mxu0 0.0
      %288 = vmatprep.subr.mxu0 0.0
      %289 = vmatpush1.msra.mxu0 0.0
      %290 = vmatprep.subr.mxu0 0.0
      %291 = vmatpush1.msra.mxu0 0.0
      %292 = vmatprep.subr.mxu0 0.0
      %293 = vmatpush1.msra.mxu0 0.0
      %294 = vmatprep.subr.mxu0 0.0
      %295 = vmatpush1.msra.mxu0 0.0
      %296 = vmatprep.subr.mxu0 0.0
      %297 = vmatpush1.msra.mxu0 0.0
      %298 = vmatprep.subr.mxu0 0.0
      %299 = vmatpush1.msra.mxu0 0.0
      %300 = vmatprep.subr.mxu0 0.0
      %301 = vmatpush1.msra.mxu0 0.0
      %302 = vmatprep.subr.mxu0 0.0
      %303 = vmatpush1.msra.mxu0 0.0
      %304 = vmatprep.subr.mxu0 0.0
      %305 = vmatpush1.msra.mxu0 0.0
      %306 = vmatprep.mubr.f32.mxu0 0.0
      %307 = vmatmul.mubr.f32.gmra.mrb[0].mxu0 %v233
      %v308 = vpop.f32.mrb[0].mxu0
      %v309 = vadd.f32 0.0, %v308
      %v310 = vpop.f32.mrb[0].mxu0
      %311 = vmatprep.mubr.f32.mxu0 0.0
      %312 = vmatmul.mubr.f32.gmra.mrb[0].mxu0 %v236
      %v313 = vpop.f32.mrb[0].mxu0
      %v314 = vadd.f32 0.0, %v313
      %v315 = vpop.f32.mrb[0].mxu0
      %316 = vdwg.mxu0
      %vm317 = vcmp.ge.f32.partialorder %v309, 0.0
      %vm318 = vcmp.ge.f32.partialorder %v314, 0.0
      %v319 = vmul.f32 %v309, 0.01
      %v320 = vmul.f32 %v314, 0.01
      %v321 = vsel %vm317, %v309, %v319
      %v322 = vsel %vm318, %v314, %v320
      %vm323 = vcmask 523264
      %324 = vst.msk [vmem:[%s218] sm:$0xff] %vm323, %v321
      %325 = vst.msk [vmem:[%s218 + $0x8] sm:$0xff] %vm323, %v322
      %s326 = smul.u32 2, %s19
      %p327 = scmp.lt.s32.totalorder %s18, 1
      %s328 = scalar_select %p327, %s18, 1
      %p329 = scmp.lt.s32.totalorder %s20, 7
      %s330 = scalar_select %p329, %s20, 7
      %p331 = scmp.lt.s32.totalorder %s326, 1
      %s332 = scalar_select %p331, %s326, 1
      %s333 = smul.addr %s330, 2
      %s334 = sadd.s32 %s332, %s333
      %s335 = smul.addr %s328, 16
      %s336 = sadd.s32 %s334, %s335
      %s337 = smul.addr %s336, 8
      %s338 = scalar_lea.vmem %s2, %s337
      // Predicated region
      $region29: #{_lambda_.3} parent=27 // pred_check
        %p339 = pneg %p108
      $region30: #{_lambda_.3} parent=27 // pred_check_branch
        %341 = sbr.rel (%p339) target = $region32
      $region31: #{_lambda_.3} parent=27 // pred_region
        %s342 = smul.u32 2, %s19
      $region32: #{_lambda_.3} parent=27 // pred_fallthru
        _
    $region28: #{_lambda_.3} parent=5 // pred_fallthru
      _
    %p343 = scmp.le.s32.totalorder 2, %s8
    // Predicated region
    $region33: #{_lambda_.3} parent=5 // pred_check
      %p344 = pneg %p343
    $region34: #{_lambda_.3} parent=5 // pred_check_branch
      %346 = sbr.rel (%p344) target = $region36
    $region35: #{_lambda_.3} parent=5 // pred_region
      %s347 = ssub.s32 %s8, 2
      // Predicated region
      $region37: #{_lambda_.3} parent=35 // pred_check
        %p348 = pneg %p114
      $region38: #{_lambda_.3} parent=35 // pred_check_branch
        %350 = sbr.rel (%p348) target = $region40
      $region39: #{_lambda_.3} parent=35 // pred_region
        %s351 = smul.u32 2, %s22
        %p352 = scmp.lt.s32.totalorder %s21, 1
        %s353 = scalar_select %p352, %s21, 1
        %p354 = scmp.lt.s32.totalorder %s23, 7
        %s355 = scalar_select %p354, %s23, 7
        %p356 = scmp.lt.s32.totalorder %s351, 1
        %s357 = scalar_select %p356, %s351, 1
        %s358 = smul.addr %s355, 2
        %s359 = sadd.s32 %s357, %s358
        %s360 = smul.addr %s353, 16
        %s361 = sadd.s32 %s359, %s360
        %s362 = smul.addr %s361, 8
        %s363 = scalar_lea.vmem %s2, %s362
      $region40: #{_lambda_.3} parent=35 // pred_fallthru
        _
    $region36: #{_lambda_.3} parent=5 // pred_fallthru
      _
  $region6: #{_lambda_.3} parent=0 // loop_footer
    %s12 = sadd.s32 1, %s8
  $region7: #{_lambda_.3} parent=0 // loop_footer_branch
    %7 = sbr.rel target = $region3
  $region8: #{_lambda_.3} parent=0 // loop_exit
    _

</llo_original>
